<compile_context>
chip_gen: v6e
topology: v6e:2x2x1
jax: 0.10.0
libtpu: 0.0.40
codegen_flags: <defaults>
</compile_context>

<pallas_src>
import jax
import jax.numpy as jnp
from jax.experimental import pallas as pl
from jax.experimental.pallas import tpu as pltpu

NEG_SLOPE = 0.1
VMEM_BUDGET_BYTES = 48 << 20  # stay well under the 64 MiB limit we request


# ----------------------------------------------------------------------------- init
def xavier_uniform(key, shape):
    # nn.init.xavier_uniform_ with default gain=1 on a PyTorch [out, in] weight.
    fan_out, fan_in = shape
    bound = jnp.sqrt(6.0 / (fan_in + fan_out))
    return jax.random.uniform(key, shape, jnp.float32, -bound, bound)


def init_params(key, embed_dim, num_features):
    k1, k2 = jax.random.split(key)
    hidden = embed_dim // 2
    return {
        "w1": xavier_uniform(k1, (hidden, embed_dim)),      # PyTorch layout [out, in]
        "b1": jnp.zeros((hidden,), jnp.float32),
        "w2": xavier_uniform(k2, (num_features, hidden)),
        "b2": jnp.zeros((num_features,), jnp.float32),
    }


# ----------------------------------------------------------------------------- kernel
def feature_decoder_kernel(z_ref, w1_ref, b1_ref, w2_ref, b2_ref, out_ref):
    z = z_ref[...]                                                          # [TM, E]

    # fc1 + bias + LeakyReLU  (weights pre-transposed to [E, H] in the wrapper)
    h = jnp.dot(z, w1_ref[...], preferred_element_type=jnp.float32) + b1_ref[...]
    h = jnp.where(h > 0, h, NEG_SLOPE * h)

    # TODO(synk): nn.Dropout(0.1) is stochastic; treated as eval-mode identity here.

    # fc2 + bias
    out = jnp.dot(h, w2_ref[...], preferred_element_type=jnp.float32) + b2_ref[...]
    out_ref[...] = out.astype(out_ref.dtype)


def _pick_row_tile(n, e, h, f):
    """Largest power-of-two row tile dividing n whose double-buffered working set
    (activations in + hidden + out, plus resident weights) fits the VMEM budget."""
    weight_bytes = 4 * (e * h + h + h * f + f)
    for tm in (2048, 1024, 512, 256, 128, 64, 32, 16, 8):
        if n % tm != 0:
            continue
        # 2x for double-buffered input/output tiles; hidden tile lives once.
        tile_bytes = 4 * (2 * tm * e + tm * h + 2 * tm * f)
        if weight_bytes + tile_bytes <= VMEM_BUDGET_BYTES:
            return tm
    return n  # n not a multiple of 8 -> single full-extent block on that axis


# ----------------------------------------------------------------------------- wrapper
def feature_decoder(z, params):
    n, e = z.shape
    # Pre-transpose once in the wrapper (free layout plumbing, keeps XLU slot free).
    w1 = params["w1"].T                      # [E, H]
    w2 = params["w2"].T                      # [H, F]
    b1 = params["b1"].reshape(1, -1)         # [1, H]
    b2 = params["b2"].reshape(1, -1)         # [1, F]
    h = w1.shape[1]
    f = w2.shape[1]

    tm = _pick_row_tile(n, e, h, f)
    grid = (n // tm,) if n % tm == 0 else (1,)

    flops = 2 * n * e * h + 2 * n * h * f
    bytes_accessed = 4 * (n * e + e * h + h + h * f + f + n * f)

    return pl.pallas_call(
        feature_decoder_kernel,
        out_shape=jax.ShapeDtypeStruct((n, f), jnp.float32),
        grid_spec=pltpu.PrefetchScalarGridSpec(
            num_scalar_prefetch=0,
            grid=grid,
            in_specs=[
                pl.BlockSpec((tm, e), lambda i: (i, 0)),     # activations: row-tiled
                pl.BlockSpec((e, h), lambda i: (0, 0)),      # fc1 weight: resident
                pl.BlockSpec((1, h), lambda i: (0, 0)),      # fc1 bias:   resident
                pl.BlockSpec((h, f), lambda i: (0, 0)),      # fc2 weight: resident
                pl.BlockSpec((1, f), lambda i: (0, 0)),      # fc2 bias:   resident
            ],
            out_specs=pl.BlockSpec((tm, f), lambda i: (i, 0)),
        ),
        compiler_params=pltpu.CompilerParams(
            dimension_semantics=("parallel",),
            vmem_limit_bytes=64 << 20,
        ),
        cost_estimate=pl.CostEstimate(
            flops=flops, transcendentals=0, bytes_accessed=bytes_accessed),
    )(z, w1, b1, w2, b2)


# ----------------------------------------------------------------------------- main
if __name__ == "__main__":
    BATCH, EMBED_DIM, NUM_FEATURES = 64, 32, 16

    key = jax.random.PRNGKey(0)
    kz, kp = jax.random.split(key)

    z = jax.random.normal(kz, (BATCH, EMBED_DIM), jnp.float32)
    params = init_params(kp, EMBED_DIM, NUM_FEATURES)

    out = feature_decoder(z, params)
    jax.block_until_ready(out)
    assert out.shape == (BATCH, NUM_FEATURES)

    # pure-JAX reference (forward-pass parity, dropout in eval mode)
    h_ref = z @ params["w1"].T + params["b1"]
    h_ref = jnp.where(h_ref > 0, h_ref, NEG_SLOPE * h_ref)
    ref = h_ref @ params["w2"].T + params["b2"]
    assert jnp.allclose(out, ref, atol=1e-5, rtol=1e-5)

    print("KERNEL_OK")
</pallas_src>

<mosaic_0001>
module attributes {stable_mosaic.version = 11 : i64} {
  func.func @feature_decoder_kernel(%arg0: i32, %arg1: memref<64x32xf32, #tpu.memory_space<vmem>>, %arg2: memref<32x16xf32, #tpu.memory_space<vmem>>, %arg3: memref<1x16xf32, #tpu.memory_space<vmem>>, %arg4: memref<16x16xf32, #tpu.memory_space<vmem>>, %arg5: memref<1x16xf32, #tpu.memory_space<vmem>>, %arg6: memref<64x16xf32, #tpu.memory_space<vmem>>) attributes {dimension_semantics = [#tpu.dimension_semantics<parallel>], iteration_bounds = array<i64: 1>, scalar_prefetch = 0 : i64, scratch_operands = 0 : i64, tpu.core_type = #tpu.core_type<tc>, window_params = [{transform_indices = @transform_0, window_bounds = array<i64: 64, 32>}, {pipeline_mode = #tpu.pipeline_mode<synchronous>, transform_indices = @transform_1, window_bounds = array<i64: 32, 16>}, {pipeline_mode = #tpu.pipeline_mode<synchronous>, transform_indices = @transform_2, window_bounds = array<i64: 1, 16>}, {pipeline_mode = #tpu.pipeline_mode<synchronous>, transform_indices = @transform_3, window_bounds = array<i64: 16, 16>}, {pipeline_mode = #tpu.pipeline_mode<synchronous>, transform_indices = @transform_4, window_bounds = array<i64: 1, 16>}, {transform_indices = @transform_5, window_bounds = array<i64: 64, 16>}]} {
    %c0 = arith.constant 0 : index
    %c0_0 = arith.constant 0 : index
    %0 = vector.load %arg1[%c0, %c0_0] : memref<64x32xf32, #tpu.memory_space<vmem>>, vector<64x32xf32>
    %c0_1 = arith.constant 0 : index
    %c0_2 = arith.constant 0 : index
    %1 = vector.load %arg2[%c0_1, %c0_2] : memref<32x16xf32, #tpu.memory_space<vmem>>, vector<32x16xf32>
    %cst = arith.constant dense<0.000000e+00> : vector<64x16xf32>
    %2 = tpu.matmul %0, %1, %cst {dimension_numbers = #tpu.dot_dimension_numbers<[1], [0], [0], [1], [0, 0, 1, 1], [], []>} : vector<64x32xf32>, vector<32x16xf32>, vector<64x16xf32> -> vector<64x16xf32>
    %c0_3 = arith.constant 0 : index
    %c0_4 = arith.constant 0 : index
    %3 = vector.load %arg3[%c0_3, %c0_4] : memref<1x16xf32, #tpu.memory_space<vmem>>, vector<1x16xf32>
    %4 = vector.broadcast %3 : vector<1x16xf32> to vector<64x16xf32>
    %5 = arith.addf %2, %4 : vector<64x16xf32>
    %cst_5 = arith.constant 0.000000e+00 : f32
    %6 = vector.broadcast %cst_5 : f32 to vector<64x16xf32>
    %7 = arith.cmpf ogt, %5, %6 : vector<64x16xf32>
    %cst_6 = arith.constant 1.000000e-01 : f32
    %8 = vector.broadcast %cst_6 : f32 to vector<64x16xf32>
    %9 = arith.mulf %8, %5 : vector<64x16xf32>
    %10 = arith.select %7, %5, %9 : vector<64x16xi1>, vector<64x16xf32>
    %c0_7 = arith.constant 0 : index
    %c0_8 = arith.constant 0 : index
    %11 = vector.load %arg4[%c0_7, %c0_8] : memref<16x16xf32, #tpu.memory_space<vmem>>, vector<16x16xf32>
    %cst_9 = arith.constant dense<0.000000e+00> : vector<64x16xf32>
    %12 = tpu.matmul %10, %11, %cst_9 {dimension_numbers = #tpu.dot_dimension_numbers<[1], [0], [0], [1], [0, 0, 1, 1], [], []>} : vector<64x16xf32>, vector<16x16xf32>, vector<64x16xf32> -> vector<64x16xf32>
    %c0_10 = arith.constant 0 : index
    %c0_11 = arith.constant 0 : index
    %13 = vector.load %arg5[%c0_10, %c0_11] : memref<1x16xf32, #tpu.memory_space<vmem>>, vector<1x16xf32>
    %14 = vector.broadcast %13 : vector<1x16xf32> to vector<64x16xf32>
    %15 = arith.addf %12, %14 : vector<64x16xf32>
    %c0_12 = arith.constant 0 : index
    %c0_13 = arith.constant 0 : index
    %16 = vector.load %arg6[%c0_12, %c0_13] : memref<64x16xf32, #tpu.memory_space<vmem>>, vector<64x16xf32>
    tpu.vector_store %arg6[%c0_12, %c0_13], %15 {strides = array<i32>} : memref<64x16xf32, #tpu.memory_space<vmem>>, vector<64x16xf32>,
    return
  }
  func.func @transform_0(%arg0: i32) -> (i32, i32) {
    %c0_i32 = arith.constant 0 : i32
    %c0_i32_0 = arith.constant 0 : i32
    return %arg0, %c0_i32 : i32, i32
  }
  func.func @transform_1(%arg0: i32) -> (i32, i32) {
    %c0_i32 = arith.constant 0 : i32
    %c0_i32_0 = arith.constant 0 : i32
    %c0_i32_1 = arith.constant 0 : i32
    return %c0_i32, %c0_i32_0 : i32, i32
  }
  func.func @transform_2(%arg0: i32) -> (i32, i32) {
    %c0_i32 = arith.constant 0 : i32
    %c0_i32_0 = arith.constant 0 : i32
    %c0_i32_1 = arith.constant 0 : i32
    return %c0_i32, %c0_i32_0 : i32, i32
  }
  func.func @transform_3(%arg0: i32) -> (i32, i32) {
    %c0_i32 = arith.constant 0 : i32
    %c0_i32_0 = arith.constant 0 : i32
    %c0_i32_1 = arith.constant 0 : i32
    return %c0_i32, %c0_i32_0 : i32, i32
  }
  func.func @transform_4(%arg0: i32) -> (i32, i32) {
    %c0_i32 = arith.constant 0 : i32
    %c0_i32_0 = arith.constant 0 : i32
    %c0_i32_1 = arith.constant 0 : i32
    return %c0_i32, %c0_i32_0 : i32, i32
  }
  func.func @transform_5(%arg0: i32) -> (i32, i32) {
    %c0_i32 = arith.constant 0 : i32
    %c0_i32_0 = arith.constant 0 : i32
    return %arg0, %c0_i32 : i32, i32
  }
}

</mosaic_0001>

<llo_original>
// kernel: tpu_custom_call.1
$region0: #{tpu_custom_call.1}
  #allocation0 [shape = 'u32[]', space=smem, size = 0x4, offset = 0x4, fixed_abs, tag = 'smem constant byte address 0x4 - core index']
  #allocation1 [shape = 'u32[144,128]{1,0:T(1,128)}', space=vmem, size = 0x12000, scoped, tag = 'internal scratch']
  %s0 = inlined_call_operand.vmem [shape: f32[64,32], index: 0, kind: input, shape index: {}]
  %s1 = inlined_call_operand.vmem [shape: f32[32,16], index: 1, kind: input, shape index: {}]
  %s2 = inlined_call_operand.vmem [shape: f32[1,16], index: 2, kind: input, shape index: {}]
  %s3 = inlined_call_operand.vmem [shape: f32[16,16], index: 3, kind: input, shape index: {}]
  %s4 = inlined_call_operand.vmem [shape: f32[1,16], index: 4, kind: input, shape index: {}]
  %s5 = inlined_call_operand.vmem [shape: f32[64,16], index: 5, kind: output, shape index: {}]
  %s6 = sld [smem:[#allocation0]]
  $region30: #{tpu_custom_call.1} parent=0
    _
  %s8 = ssub.s32 1, %s6
  %s9 = scalar_select 0, %s8, %s6
  // Predicated region
  $region2: #{tpu_custom_call.1} parent=0 // pred_check
    _
  $region3: #{tpu_custom_call.1} parent=0 // pred_check_branch
    %11 = sbr.rel (0) target = $region5
  $region4: #{tpu_custom_call.1} parent=0 // pred_region
    _
  $region5: #{tpu_custom_call.1} parent=0 // pred_fallthru
    _
  // Predicated region
  $region6: #{tpu_custom_call.1} parent=0 // pred_check
    _
  $region7: #{tpu_custom_call.1} parent=0 // pred_check_branch
    %13 = sbr.rel (0) target = $region9
  $region8: #{tpu_custom_call.1} parent=0 // pred_region
    _
  $region9: #{tpu_custom_call.1} parent=0 // pred_fallthru
    _
  // Predicated region
  $region10: #{tpu_custom_call.1} parent=0 // pred_check
    _
  $region11: #{tpu_custom_call.1} parent=0 // pred_check_branch
    %15 = sbr.rel (0) target = $region13
  $region12: #{tpu_custom_call.1} parent=0 // pred_region
    _
  $region13: #{tpu_custom_call.1} parent=0 // pred_fallthru
    _
  // Predicated region
  $region14: #{tpu_custom_call.1} parent=0 // pred_check
    _
  $region15: #{tpu_custom_call.1} parent=0 // pred_check_branch
    %17 = sbr.rel (0) target = $region17
  $region16: #{tpu_custom_call.1} parent=0 // pred_region
    _
  $region17: #{tpu_custom_call.1} parent=0 // pred_fallthru
    _
  // Predicated region
  $region18: #{tpu_custom_call.1} parent=0 // pred_check
    _
  $region19: #{tpu_custom_call.1} parent=0 // pred_check_branch
    %19 = sbr.rel (0) target = $region21
  $region20: #{tpu_custom_call.1} parent=0 // pred_region
    _
  $region21: #{tpu_custom_call.1} parent=0 // pred_fallthru
    _
  %v20 = vld [vmem:[%s0] sm:$0xff]
  %v21 = vld [vmem:[%s0 + $0x8] sm:$0xff]
  %v22 = vld [vmem:[%s0 + $0x10] sm:$0xff]
  %v23 = vld [vmem:[%s0 + $0x18] sm:$0xff]
  %v24 = vld [vmem:[%s0 + $0x20] sm:$0xff]
  %v25 = vld [vmem:[%s0 + $0x28] sm:$0xff]
  %v26 = vld [vmem:[%s0 + $0x30] sm:$0xff]
  %v27 = vld [vmem:[%s0 + $0x38] sm:$0xff]
  %v28 = vld [vmem:[%s1] sm:$0xff]
  %v29 = vld [vmem:[%s1 + $0x8] sm:$0xff]
  %v30 = vld [vmem:[%s1 + $0x10] sm:$0xff]
  %v31 = vld [vmem:[%s1 + $0x18] sm:$0xff]
  %v32 = vld [vmem:[%s2] sm:$0x1]
  %v34 = vlaneseq
  %v35 = vshrl.u32 %v34, 7
  %v36 = vsub.s32 0, %v35
  %v37 = vrot.slane %v32, %v36
  %vm39 = vcmask 261120
  %v41 = vsel %vm39, %v20, 0
  %v44 = vsel %vm39, %v21, 0
  %v47 = vsel %vm39, %v22, 0
  %v50 = vsel %vm39, %v23, 0
  %v53 = vsel %vm39, %v24, 0
  %v56 = vsel %vm39, %v25, 0
  %v59 = vsel %vm39, %v26, 0
  %v62 = vsel %vm39, %v27, 0
  %64 = vmatprep.subr.mxu0 0.0
  %65 = vmatpush1.msra.mxu0 0.0
  %66 = vmatprep.subr.mxu0 0.0
  %67 = vmatpush1.msra.mxu0 0.0
  %68 = vmatprep.subr.mxu0 0.0
  %69 = vmatpush1.msra.mxu0 0.0
  %70 = vmatprep.subr.mxu0 0.0
  %71 = vmatpush1.msra.mxu0 0.0
  %72 = vmatprep.subr.mxu0 0.0
  %73 = vmatpush1.msra.mxu0 0.0
  %74 = vmatprep.subr.mxu0 0.0
  %75 = vmatpush1.msra.mxu0 0.0
  %76 = vmatprep.subr.mxu0 0.0
  %77 = vmatpush1.msra.mxu0 0.0
  %78 = vmatprep.subr.mxu0 0.0
  %79 = vmatpush1.msra.mxu0 0.0
  %80 = vmatprep.subr.mxu0 0.0
  %81 = vmatpush1.msra.mxu0 0.0
  %82 = vmatprep.subr.mxu0 0.0
  %83 = vmatpush1.msra.mxu0 0.0
  %84 = vmatprep.subr.mxu0 0.0
  %85 = vmatpush1.msra.mxu0 0.0
  %86 = vmatprep.subr.mxu0 0.0
  %87 = vmatpush1.msra.mxu0 0.0
  %88 = vmatprep.subr.mxu0 0.0
  %89 = vmatpush1.msra.mxu0 %v31
  %90 = vmatprep.subr.mxu0 0.0
  %91 = vmatpush1.msra.mxu0 %v30
  %92 = vmatprep.subr.mxu0 0.0
  %93 = vmatpush1.msra.mxu0 %v29
  %94 = vmatprep.subr.mxu0 0.0
  %95 = vmatpush1.msra.mxu0 %v28
  %96 = vmatprep.subr.mxu0 0.0
  %97 = vmatpush2.msra.mxu0 0.0
  %98 = vmatprep.subr.mxu0 0.0
  %99 = vmatpush2.msra.mxu0 0.0
  %100 = vmatprep.subr.mxu0 0.0
  %101 = vmatpush2.msra.mxu0 0.0
  %102 = vmatprep.subr.mxu0 0.0
  %103 = vmatpush2.msra.mxu0 0.0
  %104 = vmatprep.subr.mxu0 0.0
  %105 = vmatpush2.msra.mxu0 0.0
  %106 = vmatprep.subr.mxu0 0.0
  %107 = vmatpush2.msra.mxu0 0.0
  %108 = vmatprep.subr.mxu0 0.0
  %109 = vmatpush2.msra.mxu0 0.0
  %110 = vmatprep.subr.mxu0 0.0
  %111 = vmatpush2.msra.mxu0 0.0
  %112 = vmatprep.subr.mxu0 0.0
  %113 = vmatpush2.msra.mxu0 0.0
  %114 = vmatprep.subr.mxu0 0.0
  %115 = vmatpush2.msra.mxu0 0.0
  %116 = vmatprep.subr.mxu0 0.0
  %117 = vmatpush2.msra.mxu0 0.0
  %118 = vmatprep.subr.mxu0 0.0
  %119 = vmatpush2.msra.mxu0 0.0
  %120 = vmatprep.subr.mxu0 0.0
  %121 = vmatpush2.msra.mxu0 0.0
  %122 = vmatprep.subr.mxu0 0.0
  %123 = vmatpush2.msra.mxu0 0.0
  %124 = vmatprep.subr.mxu0 0.0
  %125 = vmatpush2.msra.mxu0 0.0
  %126 = vmatprep.subr.mxu0 0.0
  %127 = vmatpush2.msra.mxu0 0.0
  %128 = vmatprep.mubr.f32.mxu0 0.0
  %129 = vmatmul.mubr.f32.gmra.mxu0 %v41
  %v130 = vpop.f32.mrf.mxu0
  %v131 = vadd.f32 %v37, %v130
  %v132 = vpop.f32.mrf.mxu0
  %133 = vmatprep.mubr.f32.mxu0 0.0
  %134 = vmatmul.mubr.f32.gmra.mxu0 %v44
  %v135 = vpop.f32.mrf.mxu0
  %v136 = vadd.f32 %v37, %v135
  %v137 = vpop.f32.mrf.mxu0
  %138 = vmatprep.mubr.f32.mxu0 0.0
  %139 = vmatmul.mubr.f32.gmra.mxu0 %v47
  %v140 = vpop.f32.mrf.mxu0
  %v141 = vadd.f32 %v37, %v140
  %v142 = vpop.f32.mrf.mxu0
  %143 = vmatprep.mubr.f32.mxu0 0.0
  %144 = vmatmul.mubr.f32.gmra.mxu0 %v50
  %v145 = vpop.f32.mrf.mxu0
  %v146 = vadd.f32 %v37, %v145
  %v147 = vpop.f32.mrf.mxu0
  %148 = vmatprep.mubr.f32.mxu0 0.0
  %149 = vmatmul.mubr.f32.gmra.mxu0 %v53
  %v150 = vpop.f32.mrf.mxu0
  %v151 = vadd.f32 %v37, %v150
  %v152 = vpop.f32.mrf.mxu0
  %153 = vmatprep.mubr.f32.mxu0 0.0
  %154 = vmatmul.mubr.f32.gmra.mxu0 %v56
  %v155 = vpop.f32.mrf.mxu0
  %v156 = vadd.f32 %v37, %v155
  %v157 = vpop.f32.mrf.mxu0
  %158 = vmatprep.mubr.f32.mxu0 0.0
  %159 = vmatmul.mubr.f32.gmra.mxu0 %v59
  %v160 = vpop.f32.mrf.mxu0
  %v161 = vadd.f32 %v37, %v160
  %v162 = vpop.f32.mrf.mxu0
  %163 = vmatprep.mubr.f32.mxu0 0.0
  %164 = vmatmul.mubr.f32.gmra.mxu0 %v62
  %v165 = vpop.f32.mrf.mxu0
  %v166 = vadd.f32 %v37, %v165
  %v167 = vpop.f32.mrf.mxu0
  %168 = vdwg.mxu0
  %vm169 = vcmp.gt.f32.partialorder %v131, 0.0
  %vm170 = vcmp.gt.f32.partialorder %v136, 0.0
  %vm171 = vcmp.gt.f32.partialorder %v141, 0.0
  %vm172 = vcmp.gt.f32.partialorder %v146, 0.0
  %vm173 = vcmp.gt.f32.partialorder %v151, 0.0
  %vm174 = vcmp.gt.f32.partialorder %v156, 0.0
  %vm175 = vcmp.gt.f32.partialorder %v161, 0.0
  %vm176 = vcmp.gt.f32.partialorder %v166, 0.0
  %v177 = vmul.f32 %v131, 0.1
  %v178 = vmul.f32 %v136, 0.1
  %v179 = vmul.f32 %v141, 0.1
  %v180 = vmul.f32 %v146, 0.1
  %v181 = vmul.f32 %v151, 0.1
  %v182 = vmul.f32 %v156, 0.1
  %v183 = vmul.f32 %v161, 0.1
  %v184 = vmul.f32 %v166, 0.1
  %v185 = vsel %vm169, %v131, %v177
  %v186 = vsel %vm170, %v136, %v178
  %v187 = vsel %vm171, %v141, %v179
  %v188 = vsel %vm172, %v146, %v180
  %v189 = vsel %vm173, %v151, %v181
  %v190 = vsel %vm174, %v156, %v182
  %v191 = vsel %vm175, %v161, %v183
  %v192 = vsel %vm176, %v166, %v184
  %v193 = vld [vmem:[%s3] sm:$0xff]
  %v194 = vld [vmem:[%s3 + $0x8] sm:$0xff]
  %v195 = vld [vmem:[%s4] sm:$0x1]
  %v197 = vlaneseq
  %v198 = vshrl.u32 %v197, 7
  %v199 = vsub.s32 0, %v198
  %v200 = vrot.slane %v195, %v199
  %vm202 = vcmask 130048
  %v204 = vsel %vm202, %v185, 0
  %v207 = vsel %vm202, %v186, 0
  %v210 = vsel %vm202, %v187, 0
  %v213 = vsel %vm202, %v188, 0
  %v216 = vsel %vm202, %v189, 0
  %v219 = vsel %vm202, %v190, 0
  %v222 = vsel %vm202, %v191, 0
  %v225 = vsel %vm202, %v192, 0
  %227 = vmatprep.subr.mxu0 0.0
  %228 = vmatpush1.msra.mxu0 0.0
  %229 = vmatprep.subr.mxu0 0.0
  %230 = vmatpush1.msra.mxu0 0.0
  %231 = vmatprep.subr.mxu0 0.0
  %232 = vmatpush1.msra.mxu0 0.0
  %233 = vmatprep.subr.mxu0 0.0
  %234 = vmatpush1.msra.mxu0 0.0
  %235 = vmatprep.subr.mxu0 0.0
  %236 = vmatpush1.msra.mxu0 0.0
  %237 = vmatprep.subr.mxu0 0.0
  %238 = vmatpush1.msra.mxu0 0.0
  %239 = vmatprep.subr.mxu0 0.0
  %240 = vmatpush1.msra.mxu0 0.0
  %241 = vmatprep.subr.mxu0 0.0
  %242 = vmatpush1.msra.mxu0 0.0
  %243 = vmatprep.subr.mxu0 0.0
  %244 = vmatpush1.msra.mxu0 0.0
  %245 = vmatprep.subr.mxu0 0.0
  %246 = vmatpush1.msra.mxu0 0.0
  %247 = vmatprep.subr.mxu0 0.0
  %248 = vmatpush1.msra.mxu0 0.0
  %249 = vmatprep.subr.mxu0 0.0
  %250 = vmatpush1.msra.mxu0 0.0
  %251 = vmatprep.subr.mxu0 0.0
  %252 = vmatpush1.msra.mxu0 0.0
  %253 = vmatprep.subr.mxu0 0.0
  %254 = vmatpush1.msra.mxu0 0.0
  %255 = vmatprep.subr.mxu0 0.0
  %256 = vmatpush1.msra.mxu0 %v194
  %257 = vmatprep.subr.mxu0 0.0
  %258 = vmatpush1.msra.mxu0 %v193
  %259 = vmatprep.subr.mxu0 0.0
  %260 = vmatpush2.msra.mxu0 0.0
  %261 = vmatprep.subr.mxu0 0.0
  %262 = vmatpush2.msra.mxu0 0.0
  %263 = vmatprep.subr.mxu0 0.0
  %264 = vmatpush2.msra.mxu0 0.0
  %265 = vmatprep.subr.mxu0 0.0
  %266 = vmatpush2.msra.mxu0 0.0
  %267 = vmatprep.subr.mxu0 0.0
  %268 = vmatpush2.msra.mxu0 0.0
  %269 = vmatprep.subr.mxu0 0.0
  %270 = vmatpush2.msra.mxu0 0.0
  %271 = vmatprep.subr.mxu0 0.0
  %272 = vmatpush2.msra.mxu0 0.0
  %273 = vmatprep.subr.mxu0 0.0
  %274 = vmatpush2.msra.mxu0 0.0
  %275 = vmatprep.subr.mxu0 0.0
  %276 = vmatpush2.msra.mxu0 0.0
  %277 = vmatprep.subr.mxu0 0.0
  %278 = vmatpush2.msra.mxu0 0.0
  %279 = vmatprep.subr.mxu0 0.0
  %280 = vmatpush2.msra.mxu0 0.0
  %281 = vmatprep.subr.mxu0 0.0
  %282 = vmatpush2.msra.mxu0 0.0
  %283 = vmatprep.subr.mxu0 0.0
  %284 = vmatpush2.msra.mxu0 0.0
  %285 = vmatprep.subr.mxu0 0.0
  %286 = vmatpush2.msra.mxu0 0.0
  %287 = vmatprep.subr.mxu0 0.0
  %288 = vmatpush2.msra.mxu0 0.0
  %289 = vmatprep.subr.mxu0 0.0
  %290 = vmatpush2.msra.mxu0 0.0
  %291 = vmatprep.mubr.f32.mxu0 0.0
  %292 = vmatmul.mubr.f32.gmra.mxu0 %v204
  %v293 = vpop.f32.mrf.mxu0
  %v294 = vadd.f32 %v200, %v293
  %v295 = vpop.f32.mrf.mxu0
  %296 = vmatprep.mubr.f32.mxu0 0.0
  %297 = vmatmul.mubr.f32.gmra.mxu0 %v207
  %v298 = vpop.f32.mrf.mxu0
  %v299 = vadd.f32 %v200, %v298
  %v300 = vpop.f32.mrf.mxu0
  %301 = vmatprep.mubr.f32.mxu0 0.0
  %302 = vmatmul.mubr.f32.gmra.mxu0 %v210
  %v303 = vpop.f32.mrf.mxu0
  %v304 = vadd.f32 %v200, %v303
  %v305 = vpop.f32.mrf.mxu0
  %306 = vmatprep.mubr.f32.mxu0 0.0
  %307 = vmatmul.mubr.f32.gmra.mxu0 %v213
  %v308 = vpop.f32.mrf.mxu0
  %v309 = vadd.f32 %v200, %v308
  %v310 = vpop.f32.mrf.mxu0
  %311 = vmatprep.mubr.f32.mxu0 0.0
  %312 = vmatmul.mubr.f32.gmra.mxu0 %v216
  %v313 = vpop.f32.mrf.mxu0
  %v314 = vadd.f32 %v200, %v313
  %v315 = vpop.f32.mrf.mxu0
  %316 = vmatprep.mubr.f32.mxu0 0.0
  %317 = vmatmul.mubr.f32.gmra.mxu0 %v219
  %v318 = vpop.f32.mrf.mxu0
  %v319 = vadd.f32 %v200, %v318
  %v320 = vpop.f32.mrf.mxu0
  %321 = vmatprep.mubr.f32.mxu0 0.0
  %322 = vmatmul.mubr.f32.gmra.mxu0 %v222
  %v323 = vpop.f32.mrf.mxu0
  %v324 = vadd.f32 %v200, %v323
  %v325 = vpop.f32.mrf.mxu0
  %326 = vmatprep.mubr.f32.mxu0 0.0
  %327 = vmatmul.mubr.f32.gmra.mxu0 %v225
  %v328 = vpop.f32.mrf.mxu0
  %v329 = vadd.f32 %v200, %v328
  %v330 = vpop.f32.mrf.mxu0
  %331 = vdwg.mxu0
  %332 = vst.msk [vmem:[%s5] sm:$0xff] %vm202, %v294
  %333 = vst.msk [vmem:[%s5 + $0x8] sm:$0xff] %vm202, %v299
  %334 = vst.msk [vmem:[%s5 + $0x10] sm:$0xff] %vm202, %v304
  %335 = vst.msk [vmem:[%s5 + $0x18] sm:$0xff] %vm202, %v309
  %336 = vst.msk [vmem:[%s5 + $0x20] sm:$0xff] %vm202, %v314
  %337 = vst.msk [vmem:[%s5 + $0x28] sm:$0xff] %vm202, %v319
  %338 = vst.msk [vmem:[%s5 + $0x30] sm:$0xff] %vm202, %v324
  %339 = vst.msk [vmem:[%s5 + $0x38] sm:$0xff] %vm202, %v329
  // Predicated region
  $region22: #{tpu_custom_call.1} parent=0 // pred_check
    _
  $region23: #{tpu_custom_call.1} parent=0 // pred_check_branch
    %341 = sbr.rel (0) target = $region25
  $region24: #{tpu_custom_call.1} parent=0 // pred_region
    _
  $region25: #{tpu_custom_call.1} parent=0 // pred_fallthru
    _
  // Predicated region
  $region26: #{tpu_custom_call.1} parent=0 // pred_check
    _
  $region27: #{tpu_custom_call.1} parent=0 // pred_check_branch
    %343 = sbr.rel (0) target = $region29
  $region28: #{tpu_custom_call.1} parent=0 // pred_region
    _
  $region29: #{tpu_custom_call.1} parent=0 // pred_fallthru
    _

</llo_original>
